<compile_context>
chip_gen: v7x
topology: tpu7x:2x2x1
jax: 0.10.0
libtpu: 0.0.40
codegen_flags: <defaults>
</compile_context>

<pallas_src>
import math

import numpy as np

import jax
import jax.numpy as jnp
from jax.experimental import pallas as pl
from jax.experimental.pallas import tpu as pltpu

# ---------------------------------------------------------------------------
# Lanczos (g=7, n=9) lgamma, collapsed to a single rational at module load.
# ---------------------------------------------------------------------------
_LANCZOS_COEF = np.array(
    [
        0.99999999999980993,
        676.5203681218851,
        -1259.1392167224028,
        771.32342877765313,
        -176.61502916214059,
        12.507343278686905,
        -0.13857109526572012,
        9.9843695780195716e-6,
        1.5056327351493116e-7,
    ],
    dtype=np.float64,
)
_HALF_LOG_2PI = 0.5 * math.log(2.0 * math.pi)


def _build_lanczos_rational():
    """A(z) = c0 + sum_i c_i/(z+i) = P(z)/Q(z); returns coeffs of P and z*Q."""
    q = np.poly(-np.arange(1.0, 9.0))            # Q(z) = prod_{i=1..8}(z+i), deg 8
    p = _LANCZOS_COEF[0] * q
    for i in range(1, 9):
        others = -np.array([k for k in range(1, 9) if k != i], dtype=np.float64)
        qi = np.poly(others)                      # Q(z)/(z+i), deg 7
        p = p + _LANCZOS_COEF[i] * np.concatenate([[0.0], qi])
    qz = np.concatenate([q, [0.0]])               # z * Q(z), deg 9
    return tuple(float(v) for v in p), tuple(float(v) for v in qz)


_P_COEF, _QZ_COEF = _build_lanczos_rational()


def _horner(coefs, z):
    acc = jnp.full_like(z, coefs[0])
    for c in coefs[1:]:
        acc = acc * z + c
    return acc


def _lgamma_pos(z):
    """log Gamma(z) for z > 0.

    lgamma(z) = lgamma(z+1) - log(z) with Lanczos(g=7, n=9) for lgamma(z+1);
    the partial-fraction sum and the trailing -log(z) are fused into a single
    rational:  log(A(z)/z) = log(P(z) / (z*Q(z))).
    Cost per call: 2 logs + 1 divide (EUP) + ~17 FMAs (VALU).
    """
    t = z + 7.5                         # z + g + 0.5
    p = _horner(_P_COEF, z)
    qz = _horner(_QZ_COEF, z)
    return _HALF_LOG_2PI + (z + 0.5) * jnp.log(t) - t + jnp.log(p / qz)


# ---------------------------------------------------------------------------
# Kernel
# ---------------------------------------------------------------------------
def _make_kernel(p_valid, r_tile, needs_mask):
    tile_elems = r_tile * 128

    def kernel(x_ref, t_ref, w_ref, out_ref):
        j = pl.program_id(1)

        @pl.when(j == 0)
        def _init():
            out_ref[...] = jnp.zeros_like(out_ref)

        x = x_ref[0].astype(jnp.float32)      # (C, R, 128) logits
        t = t_ref[0].astype(jnp.float32)      # (R, 128) target in (0, 1)
        w = w_ref[0].astype(jnp.float32)      # (R, 128) positive evidence weight

        # Softmax over the channel axis (leading dim -> elementwise VPU ops),
        # with a single per-lane reciprocal instead of C full-slab divides.
        m = jnp.max(x, axis=0)                # (R, 128)
        e = jnp.exp(x - m)                    # (C, R, 128)
        s = jnp.sum(e, axis=0)                # (R, 128)
        inv_s = pl.reciprocal(s, approx=False)

        alpha = e * (w * inv_s)               # softmax * weight, (C, R, 128)
        wp1 = w + 1.0
        beta = wp1 - alpha                    # (C, R, 128)

        # Beta(alpha, beta).log_prob(t)
        #   = (alpha-1)*log(t) + (beta-1)*log(1-t)
        #     + lgamma(alpha+beta) - lgamma(alpha) - lgamma(beta)
        # log(1-t) (not log1p) matches torch's Beta/Dirichlet f32 computation.
        log_t = jnp.log(t)                    # (R, 128)
        log_1mt = jnp.log(1.0 - t)            # (R, 128)
        lg_ab = _lgamma_pos(wp1)              # lgamma(alpha+beta) hoisted per lane

        log_prob = (
            (alpha - 1.0) * log_t
            + (beta - 1.0) * log_1mt
            + lg_ab
            - _lgamma_pos(alpha)
            - _lgamma_pos(beta)
        )
        nll = -log_prob                       # (C, R, 128)

        part = jnp.sum(nll, axis=0)           # (R, 128): C-1 elementwise adds

        if needs_mask:
            # Zero out lanes beyond the true H*W extent of this batch row.
            base = j * tile_elems
            row = jax.lax.broadcasted_iota(jnp.int32, (r_tile, 128), 0)
            lane = jax.lax.broadcasted_iota(jnp.int32, (r_tile, 128), 1)
            idx = base + row * 128 + lane
            part = jnp.where(idx < p_valid, part, 0.0)

        out_ref[...] += part[None, :, :]      # accumulate into resident block

    return kernel


def _round_up(x, m):
    return ((x + m - 1) // m) * m


def evidential_loss(inputx, target, weight):
    """inputx: (N, C, H, W) logits; target, weight: (N, H, W). Returns scalar."""
    N, C, H, W = inputx.shape
    P = H * W

    # Pad the flattened spatial axis to a multiple of 8*128 lanes.
    Pp = _round_up(P, 8 * 128)
    T = Pp // 128                              # number of 128-lane rows (mult of 8)

    # Largest tile (multiple of 8 rows, <= 64) that divides T.
    r_tile = 8
    for cand in range(64, 0, -8):
        if T % cand == 0:
            r_tile = cand
            break

    x = inputx.reshape(N, C, P)
    t = target.reshape(N, P)
    w = weight.reshape(N, P)
    if Pp != P:
        pad = Pp - P
        x = jnp.pad(x, ((0, 0), (0, 0), (0, pad)))
        t = jnp.pad(t, ((0, 0), (0, pad)), constant_values=0.5)   # keep logs finite
        w = jnp.pad(w, ((0, 0), (0, pad)), constant_values=1.0)
    x = x.reshape(N, C, T, 128)
    t = t.reshape(N, T, 128)
    w = w.reshape(N, T, 128)

    kernel = _make_kernel(p_valid=P, r_tile=r_tile, needs_mask=(Pp != P))

    padded_elems = N * C * Pp
    cost = pl.CostEstimate(
        flops=60 * padded_elems,
        transcendentals=8 * padded_elems,
        bytes_accessed=int(
            x.size * x.dtype.itemsize
            + t.size * t.dtype.itemsize
            + w.size * w.dtype.itemsize
            + N * r_tile * 128 * 4
        ),
    )

    partials = pl.pallas_call(
        kernel,
        out_shape=jax.ShapeDtypeStruct((N, r_tile, 128), jnp.float32),
        grid=(N, T // r_tile),
        in_specs=[
            pl.BlockSpec((1, C, r_tile, 128), lambda n, j: (n, 0, j, 0)),
            pl.BlockSpec((1, r_tile, 128), lambda n, j: (n, j, 0)),
            pl.BlockSpec((1, r_tile, 128), lambda n, j: (n, j, 0)),
        ],
        out_specs=pl.BlockSpec((1, r_tile, 128), lambda n, j: (n, 0, 0)),
        compiler_params=pltpu.CompilerParams(
            dimension_semantics=("parallel", "arbitrary")
        ),
        cost_estimate=cost,
    )(x, t, w)

    # torch.mean over the full N x C x H x W tensor.
    return jnp.sum(partials) / jnp.float32(N * C * P)


# ---------------------------------------------------------------------------
# Pure-JAX reference (for a sanity check against the kernel)
# ---------------------------------------------------------------------------
def _reference_loss(inputx, target, weight):
    soft = jax.nn.softmax(inputx.astype(jnp.float32), axis=1)
    wexp = weight.astype(jnp.float32)[:, None, :, :]
    texp = target.astype(jnp.float32)[:, None, :, :]
    alpha = soft * wexp
    beta = wexp - alpha + 1.0
    log_prob = (
        (alpha - 1.0) * jnp.log(texp)
        + (beta - 1.0) * jnp.log(1.0 - texp)
        + jax.scipy.special.gammaln(alpha + beta)
        - jax.scipy.special.gammaln(alpha)
        - jax.scipy.special.gammaln(beta)
    )
    return jnp.mean(-log_prob)


if __name__ == "__main__":
    key = jax.random.PRNGKey(0)
    k1, k2, k3 = jax.random.split(key, 3)

    N, C, H, W = 2, 4, 16, 16
    inputx = jax.random.normal(k1, (N, C, H, W), dtype=jnp.float32)
    # Beta log_prob needs target in (0, 1) and positive concentrations.
    target = jax.random.uniform(
        k2, (N, H, W), minval=0.05, maxval=0.95, dtype=jnp.float32
    )
    weight = jax.random.uniform(
        k3, (N, H, W), minval=1.0, maxval=5.0, dtype=jnp.float32
    )

    loss = evidential_loss(inputx, target, weight)
    jax.block_until_ready(loss)

    ref = _reference_loss(inputx, target, weight)
    err = abs(float(loss) - float(ref))
    assert err < 5e-3 * max(1.0, abs(float(ref))), (float(loss), float(ref))

    print("KERNEL_OK")
</pallas_src>

<mosaic_0001>
module attributes {stable_mosaic.version = 11 : i64} {
  func.func @kernel(%arg0: i32, %arg1: i32, %arg2: memref<1x4x8x128xf32, #tpu.memory_space<vmem>>, %arg3: memref<1x8x128xf32, #tpu.memory_space<vmem>>, %arg4: memref<1x8x128xf32, #tpu.memory_space<vmem>>, %arg5: memref<1x8x128xf32, #tpu.memory_space<vmem>>) attributes {dimension_semantics = [#tpu.dimension_semantics<parallel>, #tpu.dimension_semantics<arbitrary>], iteration_bounds = array<i64: 2, 1>, scalar_prefetch = 0 : i64, scratch_operands = 0 : i64, tpu.core_type = #tpu.core_type<tc>, window_params = [{transform_indices = @transform_0, window_bounds = array<i64: 1, 4, 8, 128>}, {transform_indices = @transform_1, window_bounds = array<i64: 1, 8, 128>}, {transform_indices = @transform_2, window_bounds = array<i64: 1, 8, 128>}, {transform_indices = @transform_3, window_bounds = array<i64: 1, 8, 128>}]} {
    %c0_i32 = arith.constant 0 : i32
    %0 = arith.cmpi eq, %arg1, %c0_i32 : i32
    %1 = arith.extui %0 : i1 to i32
    %c0_i32_0 = arith.constant 0 : i32
    %2 = arith.cmpi ne, %1, %c0_i32_0 : i32
    scf.if %2 {
      %cst_90 = arith.constant 0.000000e+00 : f32
      %259 = vector.broadcast %cst_90 : f32 to vector<1x8x128xf32>
      %c0_91 = arith.constant 0 : index
      %c0_92 = arith.constant 0 : index
      %c0_93 = arith.constant 0 : index
      %260 = vector.load %arg5[%c0_91, %c0_92, %c0_93] : memref<1x8x128xf32, #tpu.memory_space<vmem>>, vector<1x8x128xf32>
      tpu.vector_store %arg5[%c0_91, %c0_92, %c0_93], %259 {strides = array<i32>} : memref<1x8x128xf32, #tpu.memory_space<vmem>>, vector<1x8x128xf32>,
    } else {
    }
    %c0 = arith.constant 0 : index
    %c0_1 = arith.constant 0 : index
    %c0_2 = arith.constant 0 : index
    %c0_3 = arith.constant 0 : index
    %3 = vector.load %arg2[%c0, %c0_1, %c0_2, %c0_3] : memref<1x4x8x128xf32, #tpu.memory_space<vmem>>, vector<1x4x8x128xf32>
    %4 = vector.shape_cast %3 : vector<1x4x8x128xf32> to vector<4x8x128xf32>
    %c0_4 = arith.constant 0 : index
    %c0_5 = arith.constant 0 : index
    %c0_6 = arith.constant 0 : index
    %5 = vector.load %arg3[%c0_4, %c0_5, %c0_6] : memref<1x8x128xf32, #tpu.memory_space<vmem>>, vector<1x8x128xf32>
    %6 = vector.shape_cast %5 : vector<1x8x128xf32> to vector<8x128xf32>
    %c0_7 = arith.constant 0 : index
    %c0_8 = arith.constant 0 : index
    %c0_9 = arith.constant 0 : index
    %7 = vector.load %arg4[%c0_7, %c0_8, %c0_9] : memref<1x8x128xf32, #tpu.memory_space<vmem>>, vector<1x8x128xf32>
    %8 = vector.shape_cast %7 : vector<1x8x128xf32> to vector<8x128xf32>
    %cst = arith.constant dense<0xFF800000> : vector<8x128xf32>
    %9 = vector.multi_reduction <maximumf>, %4, %cst [0] : vector<4x8x128xf32> to vector<8x128xf32>
    %10 = vector.shape_cast %9 : vector<8x128xf32> to vector<1x8x128xf32>
    %11 = vector.broadcast %10 : vector<1x8x128xf32> to vector<4x8x128xf32>
    %12 = arith.subf %4, %11 : vector<4x8x128xf32>
    %13 = math.exp %12 : vector<4x8x128xf32>
    %cst_10 = arith.constant dense<0.000000e+00> : vector<8x128xf32>
    %14 = vector.multi_reduction <add>, %13, %cst_10 [0] : vector<4x8x128xf32> to vector<8x128xf32>
    %15 = tpu.reciprocal %14 : vector<8x128xf32> -> vector<8x128xf32>
    %16 = arith.mulf %8, %15 : vector<8x128xf32>
    %17 = vector.shape_cast %16 : vector<8x128xf32> to vector<1x8x128xf32>
    %18 = vector.broadcast %17 : vector<1x8x128xf32> to vector<4x8x128xf32>
    %19 = arith.mulf %13, %18 : vector<4x8x128xf32>
    %cst_11 = arith.constant 1.000000e+00 : f32
    %20 = vector.broadcast %cst_11 : f32 to vector<8x128xf32>
    %21 = arith.addf %8, %20 : vector<8x128xf32>
    %22 = vector.shape_cast %21 : vector<8x128xf32> to vector<1x8x128xf32>
    %23 = vector.broadcast %22 : vector<1x8x128xf32> to vector<4x8x128xf32>
    %24 = arith.subf %23, %19 : vector<4x8x128xf32>
    %25 = math.log %6 : vector<8x128xf32>
    %cst_12 = arith.constant 1.000000e+00 : f32
    %26 = vector.broadcast %cst_12 : f32 to vector<8x128xf32>
    %27 = arith.subf %26, %6 : vector<8x128xf32>
    %28 = math.log %27 : vector<8x128xf32>
    %cst_13 = arith.constant 7.500000e+00 : f32
    %29 = vector.broadcast %cst_13 : f32 to vector<8x128xf32>
    %30 = arith.addf %21, %29 : vector<8x128xf32>
    %cst_14 = arith.constant 1.000000e+00 : f32
    %31 = vector.broadcast %cst_14 : f32 to vector<8x128xf32>
    %32 = arith.mulf %31, %21 : vector<8x128xf32>
    %cst_15 = arith.constant 60.4583321 : f32
    %33 = vector.broadcast %cst_15 : f32 to vector<8x128xf32>
    %34 = arith.addf %32, %33 : vector<8x128xf32>
    %35 = arith.mulf %34, %21 : vector<8x128xf32>
    %cst_16 = arith.constant 1599.04248 : f32
    %36 = vector.broadcast %cst_16 : f32 to vector<8x128xf32>
    %37 = arith.addf %35, %36 : vector<8x128xf32>
    %38 = arith.mulf %37, %21 : vector<8x128xf32>
    %cst_17 = arith.constant 24165.5098 : f32
    %39 = vector.broadcast %cst_17 : f32 to vector<8x128xf32>
    %40 = arith.addf %38, %39 : vector<8x128xf32>
    %41 = arith.mulf %40, %21 : vector<8x128xf32>
    %cst_18 = arith.constant 228235.219 : f32
    %42 = vector.broadcast %cst_18 : f32 to vector<8x128xf32>
    %43 = arith.addf %41, %42 : vector<8x128xf32>
    %44 = arith.mulf %43, %21 : vector<8x128xf32>
    %cst_19 = arith.constant 1379496.25 : f32
    %45 = vector.broadcast %cst_19 : f32 to vector<8x128xf32>
    %46 = arith.addf %44, %45 : vector<8x128xf32>
    %47 = arith.mulf %46, %21 : vector<8x128xf32>
    %cst_20 = arith.constant 0x4A9F05EA : f32
    %48 = vector.broadcast %cst_20 : f32 to vector<8x128xf32>
    %49 = arith.addf %47, %48 : vector<8x128xf32>
    %50 = arith.mulf %49, %21 : vector<8x128xf32>
    %cst_21 = arith.constant 0x4B2B9D51 : f32
    %51 = vector.broadcast %cst_21 : f32 to vector<8x128xf32>
    %52 = arith.addf %50, %51 : vector<8x128xf32>
    %53 = arith.mulf %52, %21 : vector<8x128xf32>
    %cst_22 = arith.constant 0x4B220ADA : f32
    %54 = vector.broadcast %cst_22 : f32 to vector<8x128xf32>
    %55 = arith.addf %53, %54 : vector<8x128xf32>
    %cst_23 = arith.constant 1.000000e+00 : f32
    %56 = vector.broadcast %cst_23 : f32 to vector<8x128xf32>
    %57 = arith.mulf %56, %21 : vector<8x128xf32>
    %cst_24 = arith.constant 3.600000e+01 : f32
    %58 = vector.broadcast %cst_24 : f32 to vector<8x128xf32>
    %59 = arith.addf %57, %58 : vector<8x128xf32>
    %60 = arith.mulf %59, %21 : vector<8x128xf32>
    %cst_25 = arith.constant 5.460000e+02 : f32
    %61 = vector.broadcast %cst_25 : f32 to vector<8x128xf32>
    %62 = arith.addf %60, %61 : vector<8x128xf32>
    %63 = arith.mulf %62, %21 : vector<8x128xf32>
    %cst_26 = arith.constant 4.536000e+03 : f32
    %64 = vector.broadcast %cst_26 : f32 to vector<8x128xf32>
    %65 = arith.addf %63, %64 : vector<8x128xf32>
    %66 = arith.mulf %65, %21 : vector<8x128xf32>
    %cst_27 = arith.constant 2.244900e+04 : f32
    %67 = vector.broadcast %cst_27 : f32 to vector<8x128xf32>
    %68 = arith.addf %66, %67 : vector<8x128xf32>
    %69 = arith.mulf %68, %21 : vector<8x128xf32>
    %cst_28 = arith.constant 6.728400e+04 : f32
    %70 = vector.broadcast %cst_28 : f32 to vector<8x128xf32>
    %71 = arith.addf %69, %70 : vector<8x128xf32>
    %72 = arith.mulf %71, %21 : vector<8x128xf32>
    %cst_29 = arith.constant 1.181240e+05 : f32
    %73 = vector.broadcast %cst_29 : f32 to vector<8x128xf32>
    %74 = arith.addf %72, %73 : vector<8x128xf32>
    %75 = arith.mulf %74, %21 : vector<8x128xf32>
    %cst_30 = arith.constant 1.095840e+05 : f32
    %76 = vector.broadcast %cst_30 : f32 to vector<8x128xf32>
    %77 = arith.addf %75, %76 : vector<8x128xf32>
    %78 = arith.mulf %77, %21 : vector<8x128xf32>
    %cst_31 = arith.constant 4.032000e+04 : f32
    %79 = vector.broadcast %cst_31 : f32 to vector<8x128xf32>
    %80 = arith.addf %78, %79 : vector<8x128xf32>
    %81 = arith.mulf %80, %21 : vector<8x128xf32>
    %cst_32 = arith.constant 0.000000e+00 : f32
    %82 = vector.broadcast %cst_32 : f32 to vector<8x128xf32>
    %83 = arith.addf %81, %82 : vector<8x128xf32>
    %cst_33 = arith.constant 5.000000e-01 : f32
    %84 = vector.broadcast %cst_33 : f32 to vector<8x128xf32>
    %85 = arith.addf %21, %84 : vector<8x128xf32>
    %86 = math.log %30 : vector<8x128xf32>
    %87 = arith.mulf %85, %86 : vector<8x128xf32>
    %cst_34 = arith.constant 0.918938517 : f32
    %88 = vector.broadcast %cst_34 : f32 to vector<8x128xf32>
    %89 = arith.addf %88, %87 : vector<8x128xf32>
    %90 = arith.subf %89, %30 : vector<8x128xf32>
    %91 = arith.divf %55, %83 : vector<8x128xf32>
    %92 = math.log %91 : vector<8x128xf32>
    %93 = arith.addf %90, %92 : vector<8x128xf32>
    %cst_35 = arith.constant 1.000000e+00 : f32
    %94 = vector.broadcast %cst_35 : f32 to vector<4x8x128xf32>
    %95 = arith.subf %19, %94 : vector<4x8x128xf32>
    %96 = vector.shape_cast %25 : vector<8x128xf32> to vector<1x8x128xf32>
    %97 = vector.broadcast %96 : vector<1x8x128xf32> to vector<4x8x128xf32>
    %98 = arith.mulf %95, %97 : vector<4x8x128xf32>
    %cst_36 = arith.constant 1.000000e+00 : f32
    %99 = vector.broadcast %cst_36 : f32 to vector<4x8x128xf32>
    %100 = arith.subf %24, %99 : vector<4x8x128xf32>
    %101 = vector.shape_cast %28 : vector<8x128xf32> to vector<1x8x128xf32>
    %102 = vector.broadcast %101 : vector<1x8x128xf32> to vector<4x8x128xf32>
    %103 = arith.mulf %100, %102 : vector<4x8x128xf32>
    %104 = arith.addf %98, %103 : vector<4x8x128xf32>
    %105 = vector.shape_cast %93 : vector<8x128xf32> to vector<1x8x128xf32>
    %106 = vector.broadcast %105 : vector<1x8x128xf32> to vector<4x8x128xf32>
    %107 = arith.addf %104, %106 : vector<4x8x128xf32>
    %cst_37 = arith.constant 7.500000e+00 : f32
    %108 = vector.broadcast %cst_37 : f32 to vector<4x8x128xf32>
    %109 = arith.addf %19, %108 : vector<4x8x128xf32>
    %cst_38 = arith.constant 1.000000e+00 : f32
    %110 = vector.broadcast %cst_38 : f32 to vector<4x8x128xf32>
    %111 = arith.mulf %110, %19 : vector<4x8x128xf32>
    %cst_39 = arith.constant 60.4583321 : f32
    %112 = vector.broadcast %cst_39 : f32 to vector<4x8x128xf32>
    %113 = arith.addf %111, %112 : vector<4x8x128xf32>
    %114 = arith.mulf %113, %19 : vector<4x8x128xf32>
    %cst_40 = arith.constant 1599.04248 : f32
    %115 = vector.broadcast %cst_40 : f32 to vector<4x8x128xf32>
    %116 = arith.addf %114, %115 : vector<4x8x128xf32>
    %117 = arith.mulf %116, %19 : vector<4x8x128xf32>
    %cst_41 = arith.constant 24165.5098 : f32
    %118 = vector.broadcast %cst_41 : f32 to vector<4x8x128xf32>
    %119 = arith.addf %117, %118 : vector<4x8x128xf32>
    %120 = arith.mulf %119, %19 : vector<4x8x128xf32>
    %cst_42 = arith.constant 228235.219 : f32
    %121 = vector.broadcast %cst_42 : f32 to vector<4x8x128xf32>
    %122 = arith.addf %120, %121 : vector<4x8x128xf32>
    %123 = arith.mulf %122, %19 : vector<4x8x128xf32>
    %cst_43 = arith.constant 1379496.25 : f32
    %124 = vector.broadcast %cst_43 : f32 to vector<4x8x128xf32>
    %125 = arith.addf %123, %124 : vector<4x8x128xf32>
    %126 = arith.mulf %125, %19 : vector<4x8x128xf32>
    %cst_44 = arith.constant 0x4A9F05EA : f32
    %127 = vector.broadcast %cst_44 : f32 to vector<4x8x128xf32>
    %128 = arith.addf %126, %127 : vector<4x8x128xf32>
    %129 = arith.mulf %128, %19 : vector<4x8x128xf32>
    %cst_45 = arith.constant 0x4B2B9D51 : f32
    %130 = vector.broadcast %cst_45 : f32 to vector<4x8x128xf32>
    %131 = arith.addf %129, %130 : vector<4x8x128xf32>
    %132 = arith.mulf %131, %19 : vector<4x8x128xf32>
    %cst_46 = arith.constant 0x4B220ADA : f32
    %133 = vector.broadcast %cst_46 : f32 to vector<4x8x128xf32>
    %134 = arith.addf %132, %133 : vector<4x8x128xf32>
    %cst_47 = arith.constant 1.000000e+00 : f32
    %135 = vector.broadcast %cst_47 : f32 to vector<4x8x128xf32>
    %136 = arith.mulf %135, %19 : vector<4x8x128xf32>
    %cst_48 = arith.constant 3.600000e+01 : f32
    %137 = vector.broadcast %cst_48 : f32 to vector<4x8x128xf32>
    %138 = arith.addf %136, %137 : vector<4x8x128xf32>
    %139 = arith.mulf %138, %19 : vector<4x8x128xf32>
    %cst_49 = arith.constant 5.460000e+02 : f32
    %140 = vector.broadcast %cst_49 : f32 to vector<4x8x128xf32>
    %141 = arith.addf %139, %140 : vector<4x8x128xf32>
    %142 = arith.mulf %141, %19 : vector<4x8x128xf32>
    %cst_50 = arith.constant 4.536000e+03 : f32
    %143 = vector.broadcast %cst_50 : f32 to vector<4x8x128xf32>
    %144 = arith.addf %142, %143 : vector<4x8x128xf32>
    %145 = arith.mulf %144, %19 : vector<4x8x128xf32>
    %cst_51 = arith.constant 2.244900e+04 : f32
    %146 = vector.broadcast %cst_51 : f32 to vector<4x8x128xf32>
    %147 = arith.addf %145, %146 : vector<4x8x128xf32>
    %148 = arith.mulf %147, %19 : vector<4x8x128xf32>
    %cst_52 = arith.constant 6.728400e+04 : f32
    %149 = vector.broadcast %cst_52 : f32 to vector<4x8x128xf32>
    %150 = arith.addf %148, %149 : vector<4x8x128xf32>
    %151 = arith.mulf %150, %19 : vector<4x8x128xf32>
    %cst_53 = arith.constant 1.181240e+05 : f32
    %152 = vector.broadcast %cst_53 : f32 to vector<4x8x128xf32>
    %153 = arith.addf %151, %152 : vector<4x8x128xf32>
    %154 = arith.mulf %153, %19 : vector<4x8x128xf32>
    %cst_54 = arith.constant 1.095840e+05 : f32
    %155 = vector.broadcast %cst_54 : f32 to vector<4x8x128xf32>
    %156 = arith.addf %154, %155 : vector<4x8x128xf32>
    %157 = arith.mulf %156, %19 : vector<4x8x128xf32>
    %cst_55 = arith.constant 4.032000e+04 : f32
    %158 = vector.broadcast %cst_55 : f32 to vector<4x8x128xf32>
    %159 = arith.addf %157, %158 : vector<4x8x128xf32>
    %160 = arith.mulf %159, %19 : vector<4x8x128xf32>
    %cst_56 = arith.constant 0.000000e+00 : f32
    %161 = vector.broadcast %cst_56 : f32 to vector<4x8x128xf32>
    %162 = arith.addf %160, %161 : vector<4x8x128xf32>
    %cst_57 = arith.constant 5.000000e-01 : f32
    %163 = vector.broadcast %cst_57 : f32 to vector<4x8x128xf32>
    %164 = arith.addf %19, %163 : vector<4x8x128xf32>
    %165 = math.log %109 : vector<4x8x128xf32>
    %166 = arith.mulf %164, %165 : vector<4x8x128xf32>
    %cst_58 = arith.constant 0.918938517 : f32
    %167 = vector.broadcast %cst_58 : f32 to vector<4x8x128xf32>
    %168 = arith.addf %167, %166 : vector<4x8x128xf32>
    %169 = arith.subf %168, %109 : vector<4x8x128xf32>
    %170 = arith.divf %134, %162 : vector<4x8x128xf32>
    %171 = math.log %170 : vector<4x8x128xf32>
    %172 = arith.addf %169, %171 : vector<4x8x128xf32>
    %173 = arith.subf %107, %172 : vector<4x8x128xf32>
    %cst_59 = arith.constant 7.500000e+00 : f32
    %174 = vector.broadcast %cst_59 : f32 to vector<4x8x128xf32>
    %175 = arith.addf %24, %174 : vector<4x8x128xf32>
    %cst_60 = arith.constant 1.000000e+00 : f32
    %176 = vector.broadcast %cst_60 : f32 to vector<4x8x128xf32>
    %177 = arith.mulf %176, %24 : vector<4x8x128xf32>
    %cst_61 = arith.constant 60.4583321 : f32
    %178 = vector.broadcast %cst_61 : f32 to vector<4x8x128xf32>
    %179 = arith.addf %177, %178 : vector<4x8x128xf32>
    %180 = arith.mulf %179, %24 : vector<4x8x128xf32>
    %cst_62 = arith.constant 1599.04248 : f32
    %181 = vector.broadcast %cst_62 : f32 to vector<4x8x128xf32>
    %182 = arith.addf %180, %181 : vector<4x8x128xf32>
    %183 = arith.mulf %182, %24 : vector<4x8x128xf32>
    %cst_63 = arith.constant 24165.5098 : f32
    %184 = vector.broadcast %cst_63 : f32 to vector<4x8x128xf32>
    %185 = arith.addf %183, %184 : vector<4x8x128xf32>
    %186 = arith.mulf %185, %24 : vector<4x8x128xf32>
    %cst_64 = arith.constant 228235.219 : f32
    %187 = vector.broadcast %cst_64 : f32 to vector<4x8x128xf32>
    %188 = arith.addf %186, %187 : vector<4x8x128xf32>
    %189 = arith.mulf %188, %24 : vector<4x8x128xf32>
    %cst_65 = arith.constant 1379496.25 : f32
    %190 = vector.broadcast %cst_65 : f32 to vector<4x8x128xf32>
    %191 = arith.addf %189, %190 : vector<4x8x128xf32>
    %192 = arith.mulf %191, %24 : vector<4x8x128xf32>
    %cst_66 = arith.constant 0x4A9F05EA : f32
    %193 = vector.broadcast %cst_66 : f32 to vector<4x8x128xf32>
    %194 = arith.addf %192, %193 : vector<4x8x128xf32>
    %195 = arith.mulf %194, %24 : vector<4x8x128xf32>
    %cst_67 = arith.constant 0x4B2B9D51 : f32
    %196 = vector.broadcast %cst_67 : f32 to vector<4x8x128xf32>
    %197 = arith.addf %195, %196 : vector<4x8x128xf32>
    %198 = arith.mulf %197, %24 : vector<4x8x128xf32>
    %cst_68 = arith.constant 0x4B220ADA : f32
    %199 = vector.broadcast %cst_68 : f32 to vector<4x8x128xf32>
    %200 = arith.addf %198, %199 : vector<4x8x128xf32>
    %cst_69 = arith.constant 1.000000e+00 : f32
    %201 = vector.broadcast %cst_69 : f32 to vector<4x8x128xf32>
    %202 = arith.mulf %201, %24 : vector<4x8x128xf32>
    %cst_70 = arith.constant 3.600000e+01 : f32
    %203 = vector.broadcast %cst_70 : f32 to vector<4x8x128xf32>
    %204 = arith.addf %202, %203 : vector<4x8x128xf32>
    %205 = arith.mulf %204, %24 : vector<4x8x128xf32>
    %cst_71 = arith.constant 5.460000e+02 : f32
    %206 = vector.broadcast %cst_71 : f32 to vector<4x8x128xf32>
    %207 = arith.addf %205, %206 : vector<4x8x128xf32>
    %208 = arith.mulf %207, %24 : vector<4x8x128xf32>
    %cst_72 = arith.constant 4.536000e+03 : f32
    %209 = vector.broadcast %cst_72 : f32 to vector<4x8x128xf32>
    %210 = arith.addf %208, %209 : vector<4x8x128xf32>
    %211 = arith.mulf %210, %24 : vector<4x8x128xf32>
    %cst_73 = arith.constant 2.244900e+04 : f32
    %212 = vector.broadcast %cst_73 : f32 to vector<4x8x128xf32>
    %213 = arith.addf %211, %212 : vector<4x8x128xf32>
    %214 = arith.mulf %213, %24 : vector<4x8x128xf32>
    %cst_74 = arith.constant 6.728400e+04 : f32
    %215 = vector.broadcast %cst_74 : f32 to vector<4x8x128xf32>
    %216 = arith.addf %214, %215 : vector<4x8x128xf32>
    %217 = arith.mulf %216, %24 : vector<4x8x128xf32>
    %cst_75 = arith.constant 1.181240e+05 : f32
    %218 = vector.broadcast %cst_75 : f32 to vector<4x8x128xf32>
    %219 = arith.addf %217, %218 : vector<4x8x128xf32>
    %220 = arith.mulf %219, %24 : vector<4x8x128xf32>
    %cst_76 = arith.constant 1.095840e+05 : f32
    %221 = vector.broadcast %cst_76 : f32 to vector<4x8x128xf32>
    %222 = arith.addf %220, %221 : vector<4x8x128xf32>
    %223 = arith.mulf %222, %24 : vector<4x8x128xf32>
    %cst_77 = arith.constant 4.032000e+04 : f32
    %224 = vector.broadcast %cst_77 : f32 to vector<4x8x128xf32>
    %225 = arith.addf %223, %224 : vector<4x8x128xf32>
    %226 = arith.mulf %225, %24 : vector<4x8x128xf32>
    %cst_78 = arith.constant 0.000000e+00 : f32
    %227 = vector.broadcast %cst_78 : f32 to vector<4x8x128xf32>
    %228 = arith.addf %226, %227 : vector<4x8x128xf32>
    %cst_79 = arith.constant 5.000000e-01 : f32
    %229 = vector.broadcast %cst_79 : f32 to vector<4x8x128xf32>
    %230 = arith.addf %24, %229 : vector<4x8x128xf32>
    %231 = math.log %175 : vector<4x8x128xf32>
    %232 = arith.mulf %230, %231 : vector<4x8x128xf32>
    %cst_80 = arith.constant 0.918938517 : f32
    %233 = vector.broadcast %cst_80 : f32 to vector<4x8x128xf32>
    %234 = arith.addf %233, %232 : vector<4x8x128xf32>
    %235 = arith.subf %234, %175 : vector<4x8x128xf32>
    %236 = arith.divf %200, %228 : vector<4x8x128xf32>
    %237 = math.log %236 : vector<4x8x128xf32>
    %238 = arith.addf %235, %237 : vector<4x8x128xf32>
    %239 = arith.subf %173, %238 : vector<4x8x128xf32>
    %cst_81 = arith.constant 0.000000e+00 : f32
    %240 = vector.broadcast %cst_81 : f32 to vector<4x8x128xf32>
    %241 = arith.subf %240, %239 : vector<4x8x128xf32>
    %cst_82 = arith.constant dense<0.000000e+00> : vector<8x128xf32>
    %242 = vector.multi_reduction <add>, %241, %cst_82 [0] : vector<4x8x128xf32> to vector<8x128xf32>
    %c1024_i32 = arith.constant 1024 : i32
    %243 = arith.muli %arg1, %c1024_i32 : i32
    %244 = tpu.iota {dimensions = array<i32: 0>} : vector<8x128xi32>
    %245 = tpu.iota {dimensions = array<i32: 1>} : vector<8x128xi32>
    %c128_i32 = arith.constant 128 : i32
    %246 = vector.broadcast %c128_i32 : i32 to vector<8x128xi32>
    %247 = arith.muli %244, %246 : vector<8x128xi32>
    %248 = vector.broadcast %243 : i32 to vector<8x128xi32>
    %249 = arith.addi %248, %247 : vector<8x128xi32>
    %250 = arith.addi %249, %245 : vector<8x128xi32>
    %c256_i32 = arith.constant 256 : i32
    %251 = vector.broadcast %c256_i32 : i32 to vector<8x128xi32>
    %252 = arith.cmpi slt, %250, %251 : vector<8x128xi32>
    %cst_83 = arith.constant 0.000000e+00 : f32
    %253 = vector.broadcast %cst_83 : f32 to vector<8x128xf32>
    %254 = arith.select %252, %242, %253 : vector<8x128xi1>, vector<8x128xf32>
    %c0_84 = arith.constant 0 : index
    %c0_85 = arith.constant 0 : index
    %c0_86 = arith.constant 0 : index
    %255 = vector.load %arg5[%c0_84, %c0_85, %c0_86] : memref<1x8x128xf32, #tpu.memory_space<vmem>>, vector<1x8x128xf32>
    %256 = vector.shape_cast %254 : vector<8x128xf32> to vector<1x8x128xf32>
    %257 = arith.addf %255, %256 : vector<1x8x128xf32>
    %c0_87 = arith.constant 0 : index
    %c0_88 = arith.constant 0 : index
    %c0_89 = arith.constant 0 : index
    %258 = vector.load %arg5[%c0_87, %c0_88, %c0_89] : memref<1x8x128xf32, #tpu.memory_space<vmem>>, vector<1x8x128xf32>
    tpu.vector_store %arg5[%c0_87, %c0_88, %c0_89], %257 {strides = array<i32>} : memref<1x8x128xf32, #tpu.memory_space<vmem>>, vector<1x8x128xf32>,
    return
  }
  func.func @transform_0(%arg0: i32, %arg1: i32) -> (i32, i32, i32, i32) {
    %c0_i32 = arith.constant 0 : i32
    %c0_i32_0 = arith.constant 0 : i32
    %c0_i32_1 = arith.constant 0 : i32
    return %arg0, %c0_i32, %arg1, %c0_i32_0 : i32, i32, i32, i32
  }
  func.func @transform_1(%arg0: i32, %arg1: i32) -> (i32, i32, i32) {
    %c0_i32 = arith.constant 0 : i32
    %c0_i32_0 = arith.constant 0 : i32
    return %arg0, %arg1, %c0_i32 : i32, i32, i32
  }
  func.func @transform_2(%arg0: i32, %arg1: i32) -> (i32, i32, i32) {
    %c0_i32 = arith.constant 0 : i32
    %c0_i32_0 = arith.constant 0 : i32
    return %arg0, %arg1, %c0_i32 : i32, i32, i32
  }
  func.func @transform_3(%arg0: i32, %arg1: i32) -> (i32, i32, i32) {
    %c0_i32 = arith.constant 0 : i32
    %c0_i32_0 = arith.constant 0 : i32
    %c0_i32_1 = arith.constant 0 : i32
    return %arg0, %c0_i32, %c0_i32_0 : i32, i32, i32
  }
}

</mosaic_0001>

<llo_original>
// kernel: tpu_custom_call.1
$region0: #{tpu_custom_call.1}
  #allocation0 [shape = 'u32[]', space=smem, size = 0x4, offset = 0x4, fixed_abs, tag = 'smem constant byte address 0x4 - core index']
  #allocation1 [shape = 'u32[144,128]{1,0:T(1,128)}', space=vmem, size = 0x12000, scoped, tag = 'internal scratch']
  %s0 = inlined_call_operand.hbm [shape: f32[2,4,8,128], index: 0, kind: input, shape index: {}]
  %s1 = inlined_call_operand.hbm [shape: f32[2,8,128], index: 1, kind: input, shape index: {}]
  %s2 = inlined_call_operand.hbm [shape: f32[2,8,128], index: 2, kind: input, shape index: {}]
  %s3 = inlined_call_operand.hbm [shape: f32[2,8,128], index: 3, kind: output, shape index: {}]
  %s4 = sld [smem:[#allocation0]]
  $region61: #{tpu_custom_call.1} parent=0
    _
  %s6 = ssub.s32 1, %s4
  %s7 = scalar_select 0, %s6, %s4
  $region1: #{tpu_custom_call.1} parent=0
    #allocation2 [shape = 'u8[32768]{0}', space=vmem, size = 0x8000, scoped, tag = 'input window, operand 0']
    #allocation3 [shape = 's32[2]{0}', space=sflag, size = 0x8, scoped, tag = 'scoped memory for tpu_custom_call.1']
    #allocation4 [shape = 's32[2]{0}', space=sflag, size = 0x8, scoped, tag = 'scoped memory for tpu_custom_call.1']
    #allocation5 [shape = 'u8[8192]{0}', space=vmem, size = 0x2000, scoped, tag = 'input window, operand 1']
    #allocation6 [shape = 's32[2]{0}', space=sflag, size = 0x8, scoped, tag = 'scoped memory for tpu_custom_call.1']
    #allocation7 [shape = 'u8[8192]{0}', space=vmem, size = 0x2000, scoped, tag = 'input window, operand 2']
    #allocation8 [shape = 'u8[8192]{0}', space=vmem, size = 0x2000, scoped, tag = 'output window, operand 0']
    %8 = vsyncpa [#allocation3], 0
    %s9 = scalar_lea.sflag [#allocation3], 1
    %10 = vsyncpa %s9, 0
    %11 = vsyncpa [#allocation6], 0
    %s12 = scalar_lea.sflag [#allocation6], 1
    %13 = vsyncpa %s12, 0
    %14 = vsyncpa [#allocation4], 0
    %s15 = scalar_lea.sflag [#allocation4], 1
    %16 = vsyncpa %s15, 0
    loop: start=0, step=1, limit=4
    $region2: #{tpu_custom_call.1} parent=1 // loop_pre_header
      _
    $region3: #{tpu_custom_call.1} parent=1 // loop_header
      %s18 = sphi 0, %s22
      %p19 = scmp.ge.s32.totalorder %s18, 4
      %s25 = sphi 0, %s37
      %s26 = sphi 0, %s33
      %s27 = sphi 0, %s25
      %s28 = sphi 0, %s26
      %s29 = sphi 0, %s27
      %s30 = sphi 0, %s28
      %s42 = sphi 0, %s44
      %s45 = sphi 0, %s42
      %s46 = sphi 0, %s45
      %s62 = sphi 0, %s46
      %s70 = sphi 0, %s72
      %s73 = sphi 0, %s70
      %s74 = sphi 0, %s73
      %s90 = sphi 0, %s74
      %s98 = sphi 0, %s100
      %s101 = sphi 0, %s98
      %s102 = sphi 0, %s101
      %s118 = sphi 0, %s102
      %s124 = sphi 0, %s126
      %s127 = sphi 0, %s124
      %s128 = sphi 0, %s127
      %s144 = sphi 0, %s128
    $region4: #{tpu_custom_call.1} parent=1 // loop_header_branch
      %21 = sbr.rel (%p19) target = $region8
    $region5: #{tpu_custom_call.1} parent=1 // loop_body
      %s23 = ssub.s32 %s18, 1
      %s24 = ssub.s32 %s18, 2
      %s31 = sadd.s32 1, %s26
      %p32 = scmp.ge.s32.totalorder %s31, 1
      %s33 = scalar_select %p32, 0, %s31
      %s34 = sadd.s32 1, %s25
      %s35 = scalar_select %p32, %s34, %s25
      %p36 = scmp.ge.s32.totalorder %s35, 2
      %s37 = scalar_select %p36, 0, %s35
      %s38 = ssub.s32 %s25, %s37
      %s39 = ssub.s32 %s26, %s33
      %s40 = sor.u32 %s38, %s39
      %p41 = scmp.eq.s32.totalorder %s40, 0
      %s43 = sadd.s32 %s42, 1
      %s44 = scalar_select %p41, %s42, %s43
      %p47 = pneg %p41
      %p48 = scmp.eq.s32.totalorder %s18, 1
      %p49 = por %p47, %p48
      %p50 = scmp.ne.s32.totalorder %s42, %s45
      %p51 = scmp.eq.s32.totalorder %s18, 0
      %p52 = por %p50, %p51
      %p53 = scmp.ne.s32.totalorder %s42, %s45
      %p54 = scmp.eq.s32.totalorder %s23, 1
      %p55 = por %p53, %p54
      %p56 = scmp.ne.s32.totalorder %s45, %s46
      %p57 = scmp.eq.s32.totalorder %s23, 0
      %p58 = por %p56, %p57
      %p59 = scmp.ne.s32.totalorder %s45, %s46
      %p60 = scmp.eq.s32.totalorder %s24, 1
      %p61 = por %p59, %p60
      %p63 = scmp.ne.s32.totalorder %s46, %s62
      %p64 = scmp.eq.s32.totalorder %s24, 0
      %p65 = por %p63, %p64
      %s66 = ssub.s32 %s25, %s37
      %s67 = ssub.s32 %s26, %s33
      %s68 = sor.u32 %s66, %s67
      %p69 = scmp.eq.s32.totalorder %s68, 0
      %s71 = sadd.s32 %s70, 1
      %s72 = scalar_select %p69, %s70, %s71
      %p75 = pneg %p69
      %p76 = scmp.eq.s32.totalorder %s18, 1
      %p77 = por %p75, %p76
      %p78 = scmp.ne.s32.totalorder %s70, %s73
      %p79 = scmp.eq.s32.totalorder %s18, 0
      %p80 = por %p78, %p79
      %p81 = scmp.ne.s32.totalorder %s70, %s73
      %p82 = scmp.eq.s32.totalorder %s23, 1
      %p83 = por %p81, %p82
      %p84 = scmp.ne.s32.totalorder %s73, %s74
      %p85 = scmp.eq.s32.totalorder %s23, 0
      %p86 = por %p84, %p85
      %p87 = scmp.ne.s32.totalorder %s73, %s74
      %p88 = scmp.eq.s32.totalorder %s24, 1
      %p89 = por %p87, %p88
      %p91 = scmp.ne.s32.totalorder %s74, %s90
      %p92 = scmp.eq.s32.totalorder %s24, 0
      %p93 = por %p91, %p92
      %s94 = ssub.s32 %s25, %s37
      %s95 = ssub.s32 %s26, %s33
      %s96 = sor.u32 %s94, %s95
      %p97 = scmp.eq.s32.totalorder %s96, 0
      %s99 = sadd.s32 %s98, 1
      %s100 = scalar_select %p97, %s98, %s99
      %p103 = pneg %p97
      %p104 = scmp.eq.s32.totalorder %s18, 1
      %p105 = por %p103, %p104
      %p106 = scmp.ne.s32.totalorder %s98, %s101
      %p107 = scmp.eq.s32.totalorder %s18, 0
      %p108 = por %p106, %p107
      %p109 = scmp.ne.s32.totalorder %s98, %s101
      %p110 = scmp.eq.s32.totalorder %s23, 1
      %p111 = por %p109, %p110
      %p112 = scmp.ne.s32.totalorder %s101, %s102
      %p113 = scmp.eq.s32.totalorder %s23, 0
      %p114 = por %p112, %p113
      %p115 = scmp.ne.s32.totalorder %s101, %s102
      %p116 = scmp.eq.s32.totalorder %s24, 1
      %p117 = por %p115, %p116
      %p119 = scmp.ne.s32.totalorder %s102, %s118
      %p120 = scmp.eq.s32.totalorder %s24, 0
      %p121 = por %p119, %p120
      %s122 = ssub.s32 %s25, %s37
      %p123 = scmp.eq.s32.totalorder %s122, 0
      %s125 = sadd.s32 %s124, 1
      %s126 = scalar_select %p123, %s124, %s125
      %p129 = pneg %p123
      %p130 = scmp.eq.s32.totalorder %s18, 1
      %p131 = por %p129, %p130
      %p132 = scmp.ne.s32.totalorder %s124, %s127
      %p133 = scmp.eq.s32.totalorder %s18, 0
      %p134 = por %p132, %p133
      %p135 = scmp.ne.s32.totalorder %s124, %s127
      %p136 = scmp.eq.s32.totalorder %s23, 1
      %p137 = por %p135, %p136
      %p138 = scmp.ne.s32.totalorder %s127, %s128
      %p139 = scmp.eq.s32.totalorder %s23, 0
      %p140 = por %p138, %p139
      %p141 = scmp.ne.s32.totalorder %s127, %s128
      %p142 = scmp.eq.s32.totalorder %s24, 1
      %p143 = por %p141, %p142
      %p145 = scmp.ne.s32.totalorder %s128, %s144
      %p146 = scmp.eq.s32.totalorder %s24, 0
      %p147 = por %p145, %p146
      %p148 = scmp.le.s32.totalorder 1, %s18
      %p149 = scmp.lt.s32.totalorder %s18, 3
      %p150 = pnand %p148, %p149
      %p151 = pneg %p150
      // Predicated region
      $region9: #{tpu_custom_call.1} parent=5 // pred_check
        _
      $region10: #{tpu_custom_call.1} parent=5 // pred_check_branch
        %153 = sbr.rel (%p150) target = $region12
      $region11: #{tpu_custom_call.1} parent=5 // pred_region
        %s154 = ssub.s32 %s18, 1
      $region12: #{tpu_custom_call.1} parent=5 // pred_fallthru
        _
      %p155 = scmp.lt.s32.totalorder %s18, 2
      // Predicated region
      $region13: #{tpu_custom_call.1} parent=5 // pred_check
        %p156 = pneg %p155
      $region14: #{tpu_custom_call.1} parent=5 // pred_check_branch
        %158 = sbr.rel (%p156) target = $region16
      $region15: #{tpu_custom_call.1} parent=5 // pred_region
        // Predicated region
        $region17: #{tpu_custom_call.1} parent=15 // pred_check
          %p159 = pneg %p52
        $region18: #{tpu_custom_call.1} parent=15 // pred_check_branch
          %161 = sbr.rel (%p159) target = $region20
        $region19: #{tpu_custom_call.1} parent=15 // pred_region
          %s162 = sand.u32 %s42, 1
          %s163 = scalar_lea.sflag [#allocation3], %s162
          %s164 = sand.u32 %s42, 1
          %s165 = smul.addr %s164, 32
          %s166 = scalar_lea.vmem [#allocation2], %s165
          %s168 = ssub.s32 512, 512
          %169 = vsyncadd %s163, %s168
          %s170 = smul.addr %s25, 4
          %s171 = sadd.s32 %s26, %s170
          %s172 = smul.addr %s171, 128
          %s173 = scalar_lea.hbm %s0, %s172
          %s174 = sshll.u32 %s166, 4
          %s175 = int_to_ptr.vmem [resolvable:$true] %s174
          %180 = dma.hbm_to_vmem [thread:$0]  %s173, 512, %s175, %s163, 128, 128, 8
        $region20: #{tpu_custom_call.1} parent=15 // pred_fallthru
          _
        // Predicated region
        $region21: #{tpu_custom_call.1} parent=15 // pred_check
          %p181 = pneg %p80
        $region22: #{tpu_custom_call.1} parent=15 // pred_check_branch
          %183 = sbr.rel (%p181) target = $region24
        $region23: #{tpu_custom_call.1} parent=15 // pred_region
          %s184 = sand.u32 %s18, 1
          %s185 = scalar_lea.sflag [#allocation6], %s184
          %s186 = sand.u32 %s70, 1
          %s187 = smul.addr %s186, 8
          %s188 = scalar_lea.vmem [#allocation5], %s187
          %s190 = ssub.s32 128, 128
          %191 = vsyncadd %s185, %s190
          %s192 = sadd.s32 %s26, %s25
          %s193 = smul.addr %s192, 128
          %s194 = scalar_lea.hbm %s1, %s193
          %s196 = sshll.u32 %s188, 4
          %s197 = int_to_ptr.vmem [resolvable:$true] %s196
          %199 = dma.hbm_to_vmem [thread:$0]  %s194, 128, %s197, %s185
        $region24: #{tpu_custom_call.1} parent=15 // pred_fallthru
          _
        // Predicated region
        $region25: #{tpu_custom_call.1} parent=15 // pred_check
          %p200 = pneg %p108
        $region26: #{tpu_custom_call.1} parent=15 // pred_check_branch
          %202 = sbr.rel (%p200) target = $region28
        $region27: #{tpu_custom_call.1} parent=15 // pred_region
          %s203 = sand.u32 %s18, 1
          %s204 = scalar_lea.sflag [#allocation6], %s203
          %s205 = sand.u32 %s98, 1
          %s206 = smul.addr %s205, 8
          %s207 = scalar_lea.vmem [#allocation7], %s206
          %s209 = ssub.s32 128, 128
          %210 = vsyncadd %s204, %s209
          %s211 = sadd.s32 %s26, %s25
          %s212 = smul.addr %s211, 128
          %s213 = scalar_lea.hbm %s2, %s212
          %s215 = sshll.u32 %s207, 4
          %s216 = int_to_ptr.vmem [resolvable:$true] %s215
          %218 = dma.hbm_to_vmem [thread:$0]  %s213, 128, %s216, %s204
        $region28: #{tpu_custom_call.1} parent=15 // pred_fallthru
          _
      $region16: #{tpu_custom_call.1} parent=5 // pred_fallthru
        _
      %p219 = scmp.le.s32.totalorder 1, %s18
      %p220 = scmp.lt.s32.totalorder %s18, 3
      %p221 = pnand %p219, %p220
      %p222 = pneg %p221
      // Predicated region
      $region29: #{tpu_custom_call.1} parent=5 // pred_check
        _
      $region30: #{tpu_custom_call.1} parent=5 // pred_check_branch
        %224 = sbr.rel (%p221) target = $region32
      $region31: #{tpu_custom_call.1} parent=5 // pred_region
        %s225 = ssub.s32 %s18, 1
        %s226 = sand.u32 %s45, 1
        %s227 = scalar_lea.sflag [#allocation3], %s226
        %s228 = sand.u32 %s45, 1
        %s229 = smul.addr %s228, 32
        %s230 = scalar_lea.vmem [#allocation2], %s229
        // Predicated region
        $region33: #{tpu_custom_call.1} parent=31 // pred_check
          %p231 = pneg %p58
        $region34: #{tpu_custom_call.1} parent=31 // pred_check_branch
          %233 = sbr.rel (%p231) target = $region36
        $region35: #{tpu_custom_call.1} parent=31 // pred_region
          %234 = dma.done %s227, 512
        $region36: #{tpu_custom_call.1} parent=31 // pred_fallthru
          _
        %s235 = sand.u32 %s23, 1
        %s236 = scalar_lea.sflag [#allocation6], %s235
        %s237 = sand.u32 %s73, 1
        %s238 = smul.addr %s237, 8
        %s239 = scalar_lea.vmem [#allocation5], %s238
        // Predicated region
        $region37: #{tpu_custom_call.1} parent=31 // pred_check
          %p240 = pneg %p86
        $region38: #{tpu_custom_call.1} parent=31 // pred_check_branch
          %242 = sbr.rel (%p240) target = $region40
        $region39: #{tpu_custom_call.1} parent=31 // pred_region
          %243 = dma.done %s236, 128
        $region40: #{tpu_custom_call.1} parent=31 // pred_fallthru
          _
        %s244 = sand.u32 %s23, 1
        %s245 = scalar_lea.sflag [#allocation6], %s244
        %s246 = sand.u32 %s101, 1
        %s247 = smul.addr %s246, 8
        %s248 = scalar_lea.vmem [#allocation7], %s247
        // Predicated region
        $region41: #{tpu_custom_call.1} parent=31 // pred_check
          %p249 = pneg %p114
        $region42: #{tpu_custom_call.1} parent=31 // pred_check_branch
          %251 = sbr.rel (%p249) target = $region44
        $region43: #{tpu_custom_call.1} parent=31 // pred_region
          %252 = dma.done %s245, 128
        $region44: #{tpu_custom_call.1} parent=31 // pred_fallthru
          _
        %s253 = sand.u32 %s45, 1
        %s254 = scalar_lea.sflag [#allocation3], %s253
        %s255 = sand.u32 %s45, 1
        %s256 = smul.addr %s255, 32
        %s257 = scalar_lea.vmem [#allocation2], %s256
        %p258 = pneg %p58
        %p259 = pneg %p55
        %s260 = sand.u32 %s23, 1
        %s261 = scalar_lea.sflag [#allocation6], %s260
        %s262 = sand.u32 %s73, 1
        %s263 = smul.addr %s262, 8
        %s264 = scalar_lea.vmem [#allocation5], %s263
        %p265 = pneg %p86
        %p266 = pneg %p83
        %s267 = sand.u32 %s23, 1
        %s268 = scalar_lea.sflag [#allocation6], %s267
        %s269 = sand.u32 %s101, 1
        %s270 = smul.addr %s269, 8
        %s271 = scalar_lea.vmem [#allocation7], %s270
        %p272 = pneg %p114
        %p273 = pneg %p111
        %p274 = pneg %p140
        %p275 = pneg %p137
        %s276 = sand.u32 %s127, 1
        %s277 = scalar_lea.sflag [#allocation4], %s276
        %s278 = sand.u32 %s127, 1
        %s279 = smul.addr %s278, 8
        %s280 = scalar_lea.vmem [#allocation8], %s279
        %p281 = scmp.eq.s32.totalorder %s28, 0
        // Predicated region
        $region45: #{tpu_custom_call.1} parent=31 // pred_check
          %p282 = pneg %p281
        $region46: #{tpu_custom_call.1} parent=31 // pred_check_branch
          %284 = sbr.rel (%p282) target = $region48
        $region47: #{tpu_custom_call.1} parent=31 // pred_region
          %285 = vst [vmem:[%s280] sm:$0xff] 0.0
        $region48: #{tpu_custom_call.1} parent=31 // pred_fallthru
          _
        %v286 = vld [vmem:[%s230] sm:$0xff]
        %v287 = vld [vmem:[%s230 + $0x8] sm:$0xff]
        %v288 = vld [vmem:[%s230 + $0x10] sm:$0xff]
        %v289 = vld [vmem:[%s230 + $0x18] sm:$0xff]
        %v290 = vld [vmem:[%s239] sm:$0xff]
        %v291 = vld [vmem:[%s248] sm:$0xff]
        %v292 = vmax.f32 %v286, %v287
        %v293 = vmax.f32 %v288, %v289
        %v294 = vmax.f32 %v292, %v293
        %v295 = vsub.f32 %v286, %v294
        %v296 = vsub.f32 %v287, %v294
        %v297 = vsub.f32 %v288, %v294
        %v298 = vsub.f32 %v289, %v294
        %v299 = vmul.f32 %v295, 1.442695
        %v300 = vpow.pop %v299
        %v301 = vmul.f32 %v296, 1.442695
        %v302 = vpow.pop %v301
        %v303 = vmul.f32 %v297, 1.442695
        %v304 = vpow.pop %v303
        %v305 = vmul.f32 %v298, 1.442695
        %v306 = vpow.pop %v305
        %v307 = vadd.f32 %v300, %v302
        %v308 = vadd.f32 %v307, %v304
        %v309 = vadd.f32 %v308, %v306
        %v310 = vrcp.pop %v309
        %v311 = vmul.f32 %v291, %v310
        %v312 = vmul.f32 %v300, %v311
        %v313 = vmul.f32 %v302, %v311
        %v314 = vmul.f32 %v304, %v311
        %v315 = vmul.f32 %v306, %v311
        %v316 = vadd.f32 %v291, 1.0
        %v317 = vsub.f32 %v316, %v312
        %v318 = vsub.f32 %v316, %v313
        %v319 = vsub.f32 %v316, %v314
        %v320 = vsub.f32 %v316, %v315
        %v321 = vlog2.pop %v290
        %v322 = vmul.f32 %v321, 0.6931472
        %v323 = vsub.f32 1.0, %v290
        %v324 = vlog2.pop %v323
        %v325 = vmul.f32 %v324, 0.6931472
        %v326 = vadd.f32 %v316, 7.5
        %v327 = vadd.f32 %v316, 60.458332
        %v328 = vmul.f32 %v327, %v316
        %v329 = vadd.f32 %v328, 1599.0425
        %v330 = vmul.f32 %v329, %v316
        %v331 = vadd.f32 %v330, 24165.51
        %v332 = vmul.f32 %v331, %v316
        %v333 = vadd.f32 %v332, 228235.22
        %v334 = vmul.f32 %v333, %v316
        %v335 = vadd.f32 %v334, 1379496.3
        %v336 = vmul.f32 %v335, %v316
        %v337 = vadd.f32 %v336, 5210869.0
        %v338 = vmul.f32 %v337, %v316
        %v339 = vadd.f32 %v338, 11246929.0
        %v340 = vmul.f32 %v339, %v316
        %v341 = vadd.f32 %v340, 10619610.0
        %v342 = vadd.f32 %v316, 36.0
        %v343 = vmul.f32 %v342, %v316
        %v344 = vadd.f32 %v343, 546.0
        %v345 = vmul.f32 %v344, %v316
        %v346 = vadd.f32 %v345, 4536.0
        %v347 = vmul.f32 %v346, %v316
        %v348 = vadd.f32 %v347, 22449.0
        %v349 = vmul.f32 %v348, %v316
        %v350 = vadd.f32 %v349, 67284.0
        %v351 = vmul.f32 %v350, %v316
        %v352 = vadd.f32 %v351, 118124.0
        %v353 = vmul.f32 %v352, %v316
        %v354 = vadd.f32 %v353, 109584.0
        %v355 = vmul.f32 %v354, %v316
        %v356 = vadd.f32 %v355, 40320.0
        %v357 = vmul.f32 %v356, %v316
        %v358 = vadd.f32 %v357, 0.0
        %v359 = vadd.f32 %v316, 0.5
        %v360 = vlog2.pop %v326
        %v361 = vmul.f32 %v360, 0.6931472
        %v362 = vmul.f32 %v359, %v361
        %v363 = vadd.f32 %v362, 0.9189385
        %v364 = vsub.f32 %v363, %v326
        %v365 = vrcp.pop %v358
        %v366 = vmul.f32 %v341, %v365
        %v367 = vlog2.pop %v366
        %v368 = vmul.f32 %v367, 0.6931472
        %v369 = vadd.f32 %v364, %v368
        %v370 = vsub.f32 %v312, 1.0
        %v371 = vsub.f32 %v313, 1.0
        %v372 = vsub.f32 %v314, 1.0
        %v373 = vsub.f32 %v315, 1.0
        %v374 = vmul.f32 %v370, %v322
        %v375 = vmul.f32 %v371, %v322
        %v376 = vmul.f32 %v372, %v322
        %v377 = vmul.f32 %v373, %v322
        %v378 = vsub.f32 %v317, 1.0
        %v379 = vsub.f32 %v318, 1.0
        %v380 = vsub.f32 %v319, 1.0
        %v381 = vsub.f32 %v320, 1.0
        %v382 = vmul.f32 %v378, %v325
        %v383 = vmul.f32 %v379, %v325
        %v384 = vmul.f32 %v380, %v325
        %v385 = vmul.f32 %v381, %v325
        %v386 = vadd.f32 %v374, %v382
        %v387 = vadd.f32 %v375, %v383
        %v388 = vadd.f32 %v376, %v384
        %v389 = vadd.f32 %v377, %v385
        %v390 = vadd.f32 %v386, %v369
        %v391 = vadd.f32 %v387, %v369
        %v392 = vadd.f32 %v388, %v369
        %v393 = vadd.f32 %v389, %v369
        %v394 = vadd.f32 %v312, 7.5
        %v395 = vadd.f32 %v313, 7.5
        %v396 = vadd.f32 %v314, 7.5
        %v397 = vadd.f32 %v315, 7.5
        %v398 = vadd.f32 %v312, 60.458332
        %v399 = vadd.f32 %v313, 60.458332
        %v400 = vadd.f32 %v314, 60.458332
        %v401 = vadd.f32 %v315, 60.458332
        %v402 = vmul.f32 %v398, %v312
        %v403 = vmul.f32 %v399, %v313
        %v404 = vmul.f32 %v400, %v314
        %v405 = vmul.f32 %v401, %v315
        %v406 = vadd.f32 %v402, 1599.0425
        %v407 = vadd.f32 %v403, 1599.0425
        %v408 = vadd.f32 %v404, 1599.0425
        %v409 = vadd.f32 %v405, 1599.0425
        %v410 = vmul.f32 %v406, %v312
        %v411 = vmul.f32 %v407, %v313
        %v412 = vmul.f32 %v408, %v314
        %v413 = vmul.f32 %v409, %v315
        %v414 = vadd.f32 %v410, 24165.51
        %v415 = vadd.f32 %v411, 24165.51
        %v416 = vadd.f32 %v412, 24165.51
        %v417 = vadd.f32 %v413, 24165.51
        %v418 = vmul.f32 %v414, %v312
        %v419 = vmul.f32 %v415, %v313
        %v420 = vmul.f32 %v416, %v314
        %v421 = vmul.f32 %v417, %v315
        %v422 = vadd.f32 %v418, 228235.22
        %v423 = vadd.f32 %v419, 228235.22
        %v424 = vadd.f32 %v420, 228235.22
        %v425 = vadd.f32 %v421, 228235.22
        %v426 = vmul.f32 %v422, %v312
        %v427 = vmul.f32 %v423, %v313
        %v428 = vmul.f32 %v424, %v314
        %v429 = vmul.f32 %v425, %v315
        %v430 = vadd.f32 %v426, 1379496.3
        %v431 = vadd.f32 %v427, 1379496.3
        %v432 = vadd.f32 %v428, 1379496.3
        %v433 = vadd.f32 %v429, 1379496.3
        %v434 = vmul.f32 %v430, %v312
        %v435 = vmul.f32 %v431, %v313
        %v436 = vmul.f32 %v432, %v314
        %v437 = vmul.f32 %v433, %v315
        %v438 = vadd.f32 %v434, 5210869.0
        %v439 = vadd.f32 %v435, 5210869.0
        %v440 = vadd.f32 %v436, 5210869.0
        %v441 = vadd.f32 %v437, 5210869.0
        %v442 = vmul.f32 %v438, %v312
        %v443 = vmul.f32 %v439, %v313
        %v444 = vmul.f32 %v440, %v314
        %v445 = vmul.f32 %v441, %v315
        %v446 = vadd.f32 %v442, 11246929.0
        %v447 = vadd.f32 %v443, 11246929.0
        %v448 = vadd.f32 %v444, 11246929.0
        %v449 = vadd.f32 %v445, 11246929.0
        %v450 = vmul.f32 %v446, %v312
        %v451 = vmul.f32 %v447, %v313
        %v452 = vmul.f32 %v448, %v314
        %v453 = vmul.f32 %v449, %v315
        %v454 = vadd.f32 %v450, 10619610.0
        %v455 = vadd.f32 %v451, 10619610.0
        %v456 = vadd.f32 %v452, 10619610.0
        %v457 = vadd.f32 %v453, 10619610.0
        %v458 = vadd.f32 %v312, 36.0
        %v459 = vadd.f32 %v313, 36.0
        %v460 = vadd.f32 %v314, 36.0
        %v461 = vadd.f32 %v315, 36.0
        %v462 = vmul.f32 %v458, %v312
        %v463 = vmul.f32 %v459, %v313
        %v464 = vmul.f32 %v460, %v314
        %v465 = vmul.f32 %v461, %v315
        %v466 = vadd.f32 %v462, 546.0
        %v467 = vadd.f32 %v463, 546.0
        %v468 = vadd.f32 %v464, 546.0
        %v469 = vadd.f32 %v465, 546.0
        %v470 = vmul.f32 %v466, %v312
        %v471 = vmul.f32 %v467, %v313
        %v472 = vmul.f32 %v468, %v314
        %v473 = vmul.f32 %v469, %v315
        %v474 = vadd.f32 %v470, 4536.0
        %v475 = vadd.f32 %v471, 4536.0
        %v476 = vadd.f32 %v472, 4536.0
        %v477 = vadd.f32 %v473, 4536.0
        %v478 = vmul.f32 %v474, %v312
        %v479 = vmul.f32 %v475, %v313
        %v480 = vmul.f32 %v476, %v314
        %v481 = vmul.f32 %v477, %v315
        %v482 = vadd.f32 %v478, 22449.0
        %v483 = vadd.f32 %v479, 22449.0
        %v484 = vadd.f32 %v480, 22449.0
        %v485 = vadd.f32 %v481, 22449.0
        %v486 = vmul.f32 %v482, %v312
        %v487 = vmul.f32 %v483, %v313
        %v488 = vmul.f32 %v484, %v314
        %v489 = vmul.f32 %v485, %v315
        %v490 = vadd.f32 %v486, 67284.0
        %v491 = vadd.f32 %v487, 67284.0
        %v492 = vadd.f32 %v488, 67284.0
        %v493 = vadd.f32 %v489, 67284.0
        %v494 = vmul.f32 %v490, %v312
        %v495 = vmul.f32 %v491, %v313
        %v496 = vmul.f32 %v492, %v314
        %v497 = vmul.f32 %v493, %v315
        %v498 = vadd.f32 %v494, 118124.0
        %v499 = vadd.f32 %v495, 118124.0
        %v500 = vadd.f32 %v496, 118124.0
        %v501 = vadd.f32 %v497, 118124.0
        %v502 = vmul.f32 %v498, %v312
        %v503 = vmul.f32 %v499, %v313
        %v504 = vmul.f32 %v500, %v314
        %v505 = vmul.f32 %v501, %v315
        %v506 = vadd.f32 %v502, 109584.0
        %v507 = vadd.f32 %v503, 109584.0
        %v508 = vadd.f32 %v504, 109584.0
        %v509 = vadd.f32 %v505, 109584.0
        %v510 = vmul.f32 %v506, %v312
        %v511 = vmul.f32 %v507, %v313
        %v512 = vmul.f32 %v508, %v314
        %v513 = vmul.f32 %v509, %v315
        %v514 = vadd.f32 %v510, 40320.0
        %v515 = vadd.f32 %v511, 40320.0
        %v516 = vadd.f32 %v512, 40320.0
        %v517 = vadd.f32 %v513, 40320.0
        %v518 = vmul.f32 %v514, %v312
        %v519 = vmul.f32 %v515, %v313
        %v520 = vmul.f32 %v516, %v314
        %v521 = vmul.f32 %v517, %v315
        %v522 = vadd.f32 %v518, 0.0
        %v523 = vadd.f32 %v519, 0.0
        %v524 = vadd.f32 %v520, 0.0
        %v525 = vadd.f32 %v521, 0.0
        %v526 = vadd.f32 %v312, 0.5
        %v527 = vadd.f32 %v313, 0.5
        %v528 = vadd.f32 %v314, 0.5
        %v529 = vadd.f32 %v315, 0.5
        %v530 = vlog2.pop %v394
        %v531 = vmul.f32 %v530, 0.6931472
        %v532 = vlog2.pop %v395
        %v533 = vmul.f32 %v532, 0.6931472
        %v534 = vlog2.pop %v396
        %v535 = vmul.f32 %v534, 0.6931472
        %v536 = vlog2.pop %v397
        %v537 = vmul.f32 %v536, 0.6931472
        %v538 = vmul.f32 %v526, %v531
        %v539 = vmul.f32 %v527, %v533
        %v540 = vmul.f32 %v528, %v535
        %v541 = vmul.f32 %v529, %v537
        %v542 = vadd.f32 %v538, 0.9189385
        %v543 = vadd.f32 %v539, 0.9189385
        %v544 = vadd.f32 %v540, 0.9189385
        %v545 = vadd.f32 %v541, 0.9189385
        %v546 = vsub.f32 %v542, %v394
        %v547 = vsub.f32 %v543, %v395
        %v548 = vsub.f32 %v544, %v396
        %v549 = vsub.f32 %v545, %v397
        %v550 = vrcp.pop %v522
        %v551 = vmul.f32 %v454, %v550
        %v552 = vrcp.pop %v523
        %v553 = vmul.f32 %v455, %v552
        %v554 = vrcp.pop %v524
        %v555 = vmul.f32 %v456, %v554
        %v556 = vrcp.pop %v525
        %v557 = vmul.f32 %v457, %v556
        %v558 = vlog2.pop %v551
        %v559 = vmul.f32 %v558, 0.6931472
        %v560 = vlog2.pop %v553
        %v561 = vmul.f32 %v560, 0.6931472
        %v562 = vlog2.pop %v555
        %v563 = vmul.f32 %v562, 0.6931472
        %v564 = vlog2.pop %v557
        %v565 = vmul.f32 %v564, 0.6931472
        %v566 = vadd.f32 %v546, %v559
        %v567 = vadd.f32 %v547, %v561
        %v568 = vadd.f32 %v548, %v563
        %v569 = vadd.f32 %v549, %v565
        %v570 = vsub.f32 %v390, %v566
        %v571 = vsub.f32 %v391, %v567
        %v572 = vsub.f32 %v392, %v568
        %v573 = vsub.f32 %v393, %v569
        %v574 = vadd.f32 %v317, 7.5
        %v575 = vadd.f32 %v318, 7.5
        %v576 = vadd.f32 %v319, 7.5
        %v577 = vadd.f32 %v320, 7.5
        %v578 = vadd.f32 %v317, 60.458332
        %v579 = vadd.f32 %v318, 60.458332
        %v580 = vadd.f32 %v319, 60.458332
        %v581 = vadd.f32 %v320, 60.458332
        %v582 = vmul.f32 %v578, %v317
        %v583 = vmul.f32 %v579, %v318
        %v584 = vmul.f32 %v580, %v319
        %v585 = vmul.f32 %v581, %v320
        %v586 = vadd.f32 %v582, 1599.0425
        %v587 = vadd.f32 %v583, 1599.0425
        %v588 = vadd.f32 %v584, 1599.0425
        %v589 = vadd.f32 %v585, 1599.0425
        %v590 = vmul.f32 %v586, %v317
        %v591 = vmul.f32 %v587, %v318
        %v592 = vmul.f32 %v588, %v319
        %v593 = vmul.f32 %v589, %v320
        %v594 = vadd.f32 %v590, 24165.51
        %v595 = vadd.f32 %v591, 24165.51
        %v596 = vadd.f32 %v592, 24165.51
        %v597 = vadd.f32 %v593, 24165.51
        %v598 = vmul.f32 %v594, %v317
        %v599 = vmul.f32 %v595, %v318
        %v600 = vmul.f32 %v596, %v319
        %v601 = vmul.f32 %v597, %v320
        %v602 = vadd.f32 %v598, 228235.22
        %v603 = vadd.f32 %v599, 228235.22
        %v604 = vadd.f32 %v600, 228235.22
        %v605 = vadd.f32 %v601, 228235.22
        %v606 = vmul.f32 %v602, %v317
        %v607 = vmul.f32 %v603, %v318
        %v608 = vmul.f32 %v604, %v319
        %v609 = vmul.f32 %v605, %v320
        %v610 = vadd.f32 %v606, 1379496.3
        %v611 = vadd.f32 %v607, 1379496.3
        %v612 = vadd.f32 %v608, 1379496.3
        %v613 = vadd.f32 %v609, 1379496.3
        %v614 = vmul.f32 %v610, %v317
        %v615 = vmul.f32 %v611, %v318
        %v616 = vmul.f32 %v612, %v319
        %v617 = vmul.f32 %v613, %v320
        %v618 = vadd.f32 %v614, 5210869.0
        %v619 = vadd.f32 %v615, 5210869.0
        %v620 = vadd.f32 %v616, 5210869.0
        %v621 = vadd.f32 %v617, 5210869.0
        %v622 = vmul.f32 %v618, %v317
        %v623 = vmul.f32 %v619, %v318
        %v624 = vmul.f32 %v620, %v319
        %v625 = vmul.f32 %v621, %v320
        %v626 = vadd.f32 %v622, 11246929.0
        %v627 = vadd.f32 %v623, 11246929.0
        %v628 = vadd.f32 %v624, 11246929.0
        %v629 = vadd.f32 %v625, 11246929.0
        %v630 = vmul.f32 %v626, %v317
        %v631 = vmul.f32 %v627, %v318
        %v632 = vmul.f32 %v628, %v319
        %v633 = vmul.f32 %v629, %v320
        %v634 = vadd.f32 %v630, 10619610.0
        %v635 = vadd.f32 %v631, 10619610.0
        %v636 = vadd.f32 %v632, 10619610.0
        %v637 = vadd.f32 %v633, 10619610.0
        %v638 = vadd.f32 %v317, 36.0
        %v639 = vadd.f32 %v318, 36.0
        %v640 = vadd.f32 %v319, 36.0
        %v641 = vadd.f32 %v320, 36.0
        %v642 = vmul.f32 %v638, %v317
        %v643 = vmul.f32 %v639, %v318
        %v644 = vmul.f32 %v640, %v319
        %v645 = vmul.f32 %v641, %v320
        %v646 = vadd.f32 %v642, 546.0
        %v647 = vadd.f32 %v643, 546.0
        %v648 = vadd.f32 %v644, 546.0
        %v649 = vadd.f32 %v645, 546.0
        %v650 = vmul.f32 %v646, %v317
        %v651 = vmul.f32 %v647, %v318
        %v652 = vmul.f32 %v648, %v319
        %v653 = vmul.f32 %v649, %v320
        %v654 = vadd.f32 %v650, 4536.0
        %v655 = vadd.f32 %v651, 4536.0
        %v656 = vadd.f32 %v652, 4536.0
        %v657 = vadd.f32 %v653, 4536.0
        %v658 = vmul.f32 %v654, %v317
        %v659 = vmul.f32 %v655, %v318
        %v660 = vmul.f32 %v656, %v319
        %v661 = vmul.f32 %v657, %v320
        %v662 = vadd.f32 %v658, 22449.0
        %v663 = vadd.f32 %v659, 22449.0
        %v664 = vadd.f32 %v660, 22449.0
        %v665 = vadd.f32 %v661, 22449.0
        %v666 = vmul.f32 %v662, %v317
        %v667 = vmul.f32 %v663, %v318
        %v668 = vmul.f32 %v664, %v319
        %v669 = vmul.f32 %v665, %v320
        %v670 = vadd.f32 %v666, 67284.0
        %v671 = vadd.f32 %v667, 67284.0
        %v672 = vadd.f32 %v668, 67284.0
        %v673 = vadd.f32 %v669, 67284.0
        %v674 = vmul.f32 %v670, %v317
        %v675 = vmul.f32 %v671, %v318
        %v676 = vmul.f32 %v672, %v319
        %v677 = vmul.f32 %v673, %v320
        %v678 = vadd.f32 %v674, 118124.0
        %v679 = vadd.f32 %v675, 118124.0
        %v680 = vadd.f32 %v676, 118124.0
        %v681 = vadd.f32 %v677, 118124.0
        %v682 = vmul.f32 %v678, %v317
        %v683 = vmul.f32 %v679, %v318
        %v684 = vmul.f32 %v680, %v319
        %v685 = vmul.f32 %v681, %v320
        %v686 = vadd.f32 %v682, 109584.0
        %v687 = vadd.f32 %v683, 109584.0
        %v688 = vadd.f32 %v684, 109584.0
        %v689 = vadd.f32 %v685, 109584.0
        %v690 = vmul.f32 %v686, %v317
        %v691 = vmul.f32 %v687, %v318
        %v692 = vmul.f32 %v688, %v319
        %v693 = vmul.f32 %v689, %v320
        %v694 = vadd.f32 %v690, 40320.0
        %v695 = vadd.f32 %v691, 40320.0
        %v696 = vadd.f32 %v692, 40320.0
        %v697 = vadd.f32 %v693, 40320.0
        %v698 = vmul.f32 %v694, %v317
        %v699 = vmul.f32 %v695, %v318
        %v700 = vmul.f32 %v696, %v319
        %v701 = vmul.f32 %v697, %v320
        %v702 = vadd.f32 %v698, 0.0
        %v703 = vadd.f32 %v699, 0.0
        %v704 = vadd.f32 %v700, 0.0
        %v705 = vadd.f32 %v701, 0.0
        %v706 = vadd.f32 %v317, 0.5
        %v707 = vadd.f32 %v318, 0.5
        %v708 = vadd.f32 %v319, 0.5
        %v709 = vadd.f32 %v320, 0.5
        %v710 = vlog2.pop %v574
        %v711 = vmul.f32 %v710, 0.6931472
        %v712 = vlog2.pop %v575
        %v713 = vmul.f32 %v712, 0.6931472
        %v714 = vlog2.pop %v576
        %v715 = vmul.f32 %v714, 0.6931472
        %v716 = vlog2.pop %v577
        %v717 = vmul.f32 %v716, 0.6931472
        %v718 = vmul.f32 %v706, %v711
        %v719 = vmul.f32 %v707, %v713
        %v720 = vmul.f32 %v708, %v715
        %v721 = vmul.f32 %v709, %v717
        %v722 = vadd.f32 %v718, 0.9189385
        %v723 = vadd.f32 %v719, 0.9189385
        %v724 = vadd.f32 %v720, 0.9189385
        %v725 = vadd.f32 %v721, 0.9189385
        %v726 = vsub.f32 %v722, %v574
        %v727 = vsub.f32 %v723, %v575
        %v728 = vsub.f32 %v724, %v576
        %v729 = vsub.f32 %v725, %v577
        %v730 = vrcp.pop %v702
        %v731 = vmul.f32 %v634, %v730
        %v732 = vrcp.pop %v703
        %v733 = vmul.f32 %v635, %v732
        %v734 = vrcp.pop %v704
        %v735 = vmul.f32 %v636, %v734
        %v736 = vrcp.pop %v705
        %v737 = vmul.f32 %v637, %v736
        %v738 = vlog2.pop %v731
        %v739 = vmul.f32 %v738, 0.6931472
        %v740 = vlog2.pop %v733
        %v741 = vmul.f32 %v740, 0.6931472
        %v742 = vlog2.pop %v735
        %v743 = vmul.f32 %v742, 0.6931472
        %v744 = vlog2.pop %v737
        %v745 = vmul.f32 %v744, 0.6931472
        %v746 = vadd.f32 %v726, %v739
        %v747 = vadd.f32 %v727, %v741
        %v748 = vadd.f32 %v728, %v743
        %v749 = vadd.f32 %v729, %v745
        %v750 = vsub.f32 %v570, %v746
        %v751 = vsub.f32 %v571, %v747
        %v752 = vsub.f32 %v572, %v748
        %v753 = vsub.f32 %v573, %v749
        %v754 = vsub.f32 0.0, %v750
        %v755 = vsub.f32 0.0, %v751
        %v756 = vsub.f32 0.0, %v752
        %v757 = vsub.f32 0.0, %v753
        %v758 = vadd.f32 %v754, %v755
        %v759 = vadd.f32 %v758, %v756
        %v760 = vadd.f32 %v759, %v757
        %s761 = smul.u32 %s28, 1024
        %v762 = vlaneseq
        %v763 = vshrl.u32 %v762, 7
        %v764 = vlaneseq
        %v765 = vand.u32 %v764, 127
        %v766 = vmul.u32 %v763, 128
        %v767 = vstv %s761
        %v768 = vadd.s32 %v767, %v766
        %v769 = vadd.s32 %v768, %v765
        %vm770 = vcmp.lt.s32.totalorder %v769, 256
        %v771 = vsel %vm770, %v760, 0.0
        %v772 = vld [vmem:[%s280] sm:$0xff]
        %v773 = vadd.f32 %v772, %v771
        %774 = vst [vmem:[%s280] sm:$0xff] %v773
        %s775 = sand.u32 %s127, 1
        %s776 = scalar_lea.sflag [#allocation4], %s775
        %s777 = sand.u32 %s127, 1
        %s778 = smul.addr %s777, 8
        %s779 = scalar_lea.vmem [#allocation8], %s778
        // Predicated region
        $region49: #{tpu_custom_call.1} parent=31 // pred_check
          %p780 = pneg %p137
        $region50: #{tpu_custom_call.1} parent=31 // pred_check_branch
          %782 = sbr.rel (%p780) target = $region52
        $region51: #{tpu_custom_call.1} parent=31 // pred_region
          %s784 = ssub.s32 128, 128
          %785 = vsyncadd %s776, %s784
          %s786 = smul.addr %s27, 128
          %s787 = scalar_lea.hbm %s3, %s786
          %s789 = sshll.u32 %s779, 4
          %s790 = int_to_ptr.vmem [resolvable:$true] %s789
          %792 = dma.vmem_to_hbm [thread:$0]  %s790, 128, %s787, %s776
        $region52: #{tpu_custom_call.1} parent=31 // pred_fallthru
          _
      $region32: #{tpu_custom_call.1} parent=5 // pred_fallthru
        _
      %p793 = scmp.le.s32.totalorder 2, %s18
      // Predicated region
      $region53: #{tpu_custom_call.1} parent=5 // pred_check
        %p794 = pneg %p793
      $region54: #{tpu_custom_call.1} parent=5 // pred_check_branch
        %796 = sbr.rel (%p794) target = $region56
      $region55: #{tpu_custom_call.1} parent=5 // pred_region
        %s797 = ssub.s32 %s18, 2
        // Predicated region
        $region57: #{tpu_custom_call.1} parent=55 // pred_check
          %p798 = pneg %p143
        $region58: #{tpu_custom_call.1} parent=55 // pred_check_branch
          %800 = sbr.rel (%p798) target = $region60
        $region59: #{tpu_custom_call.1} parent=55 // pred_region
          %s801 = sand.u32 %s128, 1
          %s802 = scalar_lea.sflag [#allocation4], %s801
          %s803 = sand.u32 %s128, 1
          %s804 = smul.addr %s803, 8
          %s805 = scalar_lea.vmem [#allocation8], %s804
          %806 = dma.done %s802, 128
        $region60: #{tpu_custom_call.1} parent=55 // pred_fallthru
          _
      $region56: #{tpu_custom_call.1} parent=5 // pred_fallthru
        _
    $region6: #{tpu_custom_call.1} parent=1 // loop_footer
      %s22 = sadd.s32 1, %s18
    $region7: #{tpu_custom_call.1} parent=1 // loop_footer_branch
      %17 = sbr.rel target = $region3
    $region8: #{tpu_custom_call.1} parent=1 // loop_exit
      _
    %807 = vsyncpa [#allocation3], 1
    %s808 = scalar_lea.sflag [#allocation3], 1
    %809 = vsyncpa %s808, 1
    %810 = vsyncpa [#allocation6], 1
    %s811 = scalar_lea.sflag [#allocation6], 1
    %812 = vsyncpa %s811, 1
    %813 = vsyncpa [#allocation4], 1
    %s814 = scalar_lea.sflag [#allocation4], 1
    %815 = vsyncpa %s814, 1

</llo_original>
